<compile_context>
chip_gen: v7x
topology: tpu7x:2x2x1
jax: 0.10.0
libtpu: 0.0.40
codegen_flags: <defaults>
</compile_context>

<pallas_src>
import functools

import jax
import jax.numpy as jnp
from jax import lax
from jax.experimental import pallas as pl
from jax.experimental.pallas import tpu as pltpu


def _round_up(v, mult):
    return ((v + mult - 1) // mult) * mult


def _vmem_limit_bytes(nbytes):
    # Derive the scoped-VMEM request from the chip's physical VMEM (leave ~25%
    # headroom for Mosaic internal scratch / double-buffering); floor 32 MiB
    # (v5e's scoped default is only 16 MiB).
    try:
        cap = int(getattr(pltpu.get_tpu_info(), "vmem_capacity_bytes", 0)) or (128 << 20)
    except Exception:  # pragma: no cover - defensive
        cap = 128 << 20
    hi = (cap * 3) // 4
    return int(min(max(4 * nbytes, 32 << 20), hi))


# ----------------------------- Pallas kernels ------------------------------


def _gram_kernel(*refs, h, n_pad, d_pad, p_pad, T, t_tile, has_u):
    """T-tiled Gram / cross accumulation with in-kernel delay embedding.

    Per time tile builds (from shifted windows of raw x — no HBM Hankel):
        Om = [x[:, t0:t0+Tt]; ...; x[:, t0+h-1:...]; U_tile; zero pad rows]
        Y2 = [x[:, t0+1:...]; ...; x[:, t0+h:...]]
    into persistent VMEM scratch and accumulates into the resident outputs
        G  += Om @ Om^T   (p_pad, p_pad)
        Ct += Y2 @ Om^T   (q_pad, p_pad)   # C^T, so no transpose downstream
    via dot_general contracting the T (lane) axis of both operands.
    """
    if has_u:
        xa_ref, xb_ref, u_ref, g_ref, ct_ref, om_sc, y2_sc = refs
    else:
        xa_ref, xb_ref, g_ref, ct_ref, om_sc, y2_sc = refs
        u_ref = None

    t = pl.program_id(1)
    nt = pl.num_programs(1)
    pad0 = h * n_pad + d_pad

    @pl.when(t == 0)
    def _init():
        g_ref[0] = jnp.zeros_like(g_ref[0])
        ct_ref[0] = jnp.zeros_like(ct_ref[0])
        if p_pad > pad0:  # pad rows of Omega written once, stay zero forever
            om_sc[pad0:, :] = jnp.zeros((p_pad - pad0, t_tile), jnp.float32)

    xa = xa_ref[0]                                    # (n_pad, t_tile)
    xb = xb_ref[0]                                    # (n_pad, 128) halo columns
    xx = jnp.concatenate([xa, xb], axis=1)            # (n_pad, t_tile + 128)

    def _write(valid):
        for k in range(h):
            w = xx[:, k:k + t_tile]
            if valid is not None:
                w = w * valid
            om_sc[k * n_pad:(k + 1) * n_pad, :] = w
            # Y2 needs no mask: invalid columns pair with zeroed Omega columns.
            y2_sc[k * n_pad:(k + 1) * n_pad, :] = xx[:, k + 1:k + 1 + t_tile]

    if T % t_tile:  # only the last tile can contain invalid Hankel columns
        is_last = t == nt - 1

        @pl.when(is_last)
        def _():
            col = t * t_tile + lax.broadcasted_iota(jnp.int32, (1, t_tile), 1)
            _write((col < T).astype(xx.dtype))

        @pl.when(jnp.logical_not(is_last))
        def _():
            _write(None)
    else:
        _write(None)

    if has_u:
        # Control rows are already zero-padded beyond T in HBM -> no mask.
        om_sc[h * n_pad:h * n_pad + d_pad, :] = u_ref[0]

    om = om_sc[...]
    y2 = y2_sc[...]
    dn = (((1,), (1,)), ((), ()))                     # contract T on both sides
    g_ref[0] += lax.dot_general(om, om, dn, preferred_element_type=jnp.float32)
    ct_ref[0] += lax.dot_general(y2, om, dn, preferred_element_type=jnp.float32)


def _prox_kernel(pinv_ref, ct_ref, a_ref, *, rho, max_it):
    """Proximal-point iterations directly in A-space (P_inv is symmetric):

        A_1     = C^T @ P_inv                      (first iter with A_0 = 0)
        A_{k+1} = (C^T + rho * A_k) @ P_inv

    so the (q_pad, p_pad) result is produced lane-dense with no final transpose.
    """
    pinv = pinv_ref[0]       # (p_pad, p_pad)
    ct = ct_ref[0]           # (q_pad, p_pad)

    if max_it <= 0:
        a_ref[0] = jnp.zeros_like(ct)
        return

    a0 = jnp.dot(ct, pinv, preferred_element_type=jnp.float32)

    def body(_, a):
        return jnp.dot(ct + rho * a, pinv, preferred_element_type=jnp.float32)

    # NOTE: with rho = 1/lam_prox ~ 1e-8 the fixed point is reached within 1-2
    # iterations; the full max_it is kept to preserve the module's semantics.
    a = lax.fori_loop(0, max_it - 1, body, a0, unroll=True)
    a_ref[0] = a


# ----------------------------- pallas_call glue -----------------------------


def _batched_gram(x_pad, u_pad, *, h, n_pad, d_pad, p_pad, q_pad, T, t_tile, nt):
    bs = x_pad.shape[0]
    has_u = u_pad is not None
    halo = 128
    kernel = functools.partial(_gram_kernel, h=h, n_pad=n_pad, d_pad=d_pad,
                               p_pad=p_pad, T=T, t_tile=t_tile, has_u=has_u)

    in_specs = [
        pl.BlockSpec((1, n_pad, t_tile), lambda b, t: (b, 0, t)),       # x tile
        pl.BlockSpec((1, n_pad, halo),                                  # 128-col halo
                     lambda b, t, m_=t_tile // halo: (b, 0, (t + 1) * m_)),
    ]
    args = [x_pad, x_pad]
    if has_u:
        in_specs.append(pl.BlockSpec((1, d_pad, t_tile), lambda b, t: (b, 0, t)))
        args.append(u_pad)

    need = 4 * (2 * n_pad * t_tile + 2 * n_pad * halo
                + (2 * d_pad * t_tile if has_u else 0)
                + 2 * p_pad * p_pad + 2 * q_pad * p_pad
                + (p_pad + q_pad) * t_tile)

    # TODO(synk): for v7x with bs == 1, a second "parallel" axis over 128-wide
    #             column stripes of G/Ct would use both TensorCores.
    return pl.pallas_call(
        kernel,
        out_shape=(jax.ShapeDtypeStruct((bs, p_pad, p_pad), jnp.float32),
                   jax.ShapeDtypeStruct((bs, q_pad, p_pad), jnp.float32)),
        grid=(bs, nt),
        in_specs=in_specs,
        out_specs=(
            pl.BlockSpec((1, p_pad, p_pad), lambda b, t: (b, 0, 0)),
            pl.BlockSpec((1, q_pad, p_pad), lambda b, t: (b, 0, 0)),
        ),
        scratch_shapes=[pltpu.VMEM((p_pad, t_tile), jnp.float32),   # Omega tile
                        pltpu.VMEM((q_pad, t_tile), jnp.float32)],  # Y2 tile
        compiler_params=pltpu.CompilerParams(
            dimension_semantics=("parallel", "arbitrary"),
            vmem_limit_bytes=_vmem_limit_bytes(need)),
    )(*args)


def _batched_prox(pinv, ct, *, rho, max_it):
    bs, p_pad, _ = pinv.shape
    q_pad = ct.shape[1]
    kernel = functools.partial(_prox_kernel, rho=rho, max_it=max_it)
    need = 4 * (2 * p_pad * p_pad + 4 * q_pad * p_pad)
    return pl.pallas_call(
        kernel,
        out_shape=jax.ShapeDtypeStruct((bs, q_pad, p_pad), jnp.float32),
        grid=(bs,),
        in_specs=[pl.BlockSpec((1, p_pad, p_pad), lambda b: (b, 0, 0)),
                  pl.BlockSpec((1, q_pad, p_pad), lambda b: (b, 0, 0))],
        out_specs=pl.BlockSpec((1, q_pad, p_pad), lambda b: (b, 0, 0)),
        compiler_params=pltpu.CompilerParams(
            dimension_semantics=("parallel",),
            vmem_limit_bytes=_vmem_limit_bytes(need)),
    )(pinv, ct)


# ------------------------------ DelayedDMDc ---------------------------------


def delayed_dmdc_forward(x, r=None, d=0, U=None, return_USV=False,
                         a_method='prox', m_prox=10, lam_prox=1.0e8,
                         A_reg=1.0e-8, missing_states=0, history=2,
                         a_dtype='float', t_tile=1024):
    """Mirrors DelayedDMDc.forward (a_method='prox', a_dtype='float').

    Returns A of shape (bs, history*n, history*n + d) (square when d == 0).
    """
    # TODO(synk): a_method='svd' / return_USV branch (torch.svd) not implemented;
    #             the module's forward defaults use the prox estimator below.
    x = jnp.asarray(x, jnp.float32)
    bs, n, m = x.shape
    h = int(history)
    assert 0 < h <= 128, "history must fit within the 128-column halo"
    T = m - h
    rho = 1.0 / lam_prox
    d_val = int(d) if (U is not None and d) else 0

    # --- padding for lane/sublane-dense tiles and full MXU tiles -------------
    n_pad = _round_up(n, 8)
    d_pad = _round_up(d_val, 8) if d_val else 0   # no dummy control rows for d=0
    q_pad = h * n_pad                             # multiple of 8
    p_pad = _round_up(h * n_pad + d_pad, 128)     # multiple of 128 (lane dense)

    halo = 128
    t_tile = _round_up(min(int(t_tile), _round_up(T, 128)), 128)
    nt = -(-T // t_tile)
    T_pad = nt * t_tile
    m_x = T_pad + halo                            # halo block always in range

    x_pad = jnp.zeros((bs, n_pad, m_x), jnp.float32).at[:, :n, :m].set(x)
    if d_val:
        u = jnp.asarray(U, jnp.float32)
        u_pad = jnp.zeros((bs, d_pad, T_pad), jnp.float32).at[:, :d_val, :T].set(u)
    else:
        u_pad = None

    # Pallas: batched, T-tiled Gram (Om Om^T) and cross (Y2 Om^T = C^T) matrices.
    G, Ct = _batched_gram(x_pad, u_pad, h=h, n_pad=n_pad, d_pad=d_pad,
                          p_pad=p_pad, q_pad=q_pad, T=T, t_tile=t_tile, nt=nt)

    # Valid (unpadded) row / column index sets.
    q_idx = (jnp.arange(h)[:, None] * n_pad + jnp.arange(n)[None, :]).reshape(-1)
    if d_val:
        p_idx = jnp.concatenate([q_idx, h * n_pad + jnp.arange(d_val)])
    else:
        p_idx = q_idx
    p_true = int(p_idx.shape[0])

    # Regularized inverse on the true sub-block only, scattered back into the
    # 128-padded system (padded rows/cols stay exactly zero -> block diagonal).
    # TODO(synk): batched matrix inverse has no Pallas TPU primitive; kept in
    #             plain JAX/XLA.
    G_small = G[:, p_idx[:, None], p_idx[None, :]]
    P_inv_small = jnp.linalg.inv(
        G_small + (rho + A_reg) * jnp.eye(p_true, dtype=G.dtype)[None])
    P_inv = jnp.zeros((bs, p_pad, p_pad), jnp.float32).at[
        :, p_idx[:, None], p_idx[None, :]].set(P_inv_small)

    # Pallas: proximal-point iterations, lane-dense (q_pad, p_pad) output.
    A_pad = _batched_prox(P_inv, Ct, rho=rho, max_it=int(m_prox))

    # Gather the valid (unpadded) rows / columns back out.
    return A_pad[:, q_idx[:, None], p_idx[None, :]]


# -------------------------------- reference ---------------------------------


def _delay_embed(x, h):
    """Hankel / time-delay embedding. Returns Y1, Y2 of shape (bs, h*n, m-h)."""
    bs, n, m = x.shape
    cols = m - h + 1
    Y = jnp.concatenate([x[:, :, k:k + cols] for k in range(h)], axis=1)
    return Y[:, :, :-1], Y[:, :, 1:]


def _reference(x, d=0, U=None, m_prox=10, lam_prox=1.0e8, A_reg=1.0e-8,
               history=2):
    hi = lax.Precision.HIGHEST
    x = x.astype(jnp.float32)
    rho = 1.0 / lam_prox
    Y1, Y2 = _delay_embed(x, history)
    if U is not None and d:
        omega = jnp.concatenate([Y1, U.astype(jnp.float32)], axis=1)
    else:
        omega = Y1
    G = jnp.einsum("bpt,bqt->bpq", omega, omega, precision=hi)
    C = jnp.einsum("bpt,bqt->bpq", omega, Y2, precision=hi)
    p = omega.shape[1]
    P_inv = jnp.linalg.inv(G + (rho + A_reg) * jnp.eye(p, dtype=G.dtype)[None])
    at = jnp.zeros_like(C)
    for _ in range(m_prox):
        at = jnp.einsum("bij,bjk->bik", P_inv, C + rho * at, precision=hi)
    return jnp.swapaxes(at, 1, 2)


# ---------------------------------- main -------------------------------------

if __name__ == "__main__":
    key = jax.random.PRNGKey(0)
    bs, n, m = 2, 4, 16          # X: (bs, n, m)
    history = 2                  # -> A: (bs, history*n, history*n) = (2, 8, 8)
    k1, k2 = jax.random.split(key)
    x = jax.random.normal(k1, (bs, n, m), dtype=jnp.float32)

    # ---- plain delayed-DMD path (d = 0, no control inputs) ----
    A = delayed_dmdc_forward(x, r=None, d=0, U=None, m_prox=10,
                             lam_prox=1.0e8, A_reg=1.0e-8, history=history)
    A = jax.block_until_ready(A)
    A_ref = _reference(x, d=0, U=None, m_prox=10, lam_prox=1.0e8,
                       A_reg=1.0e-8, history=history)
    assert A.shape == (bs, history * n, history * n), A.shape
    assert jnp.allclose(A, A_ref, atol=1e-3, rtol=1e-3), (
        float(jnp.max(jnp.abs(A - A_ref))))

    # ---- DMDc path with control inputs U: (bs, d, m - history) ----
    d = 3
    U = jax.random.normal(k2, (bs, d, m - history), dtype=jnp.float32)
    Ac = delayed_dmdc_forward(x, r=None, d=d, U=U, m_prox=10,
                              lam_prox=1.0e8, A_reg=1.0e-8, history=history)
    Ac = jax.block_until_ready(Ac)
    Ac_ref = _reference(x, d=d, U=U, m_prox=10, lam_prox=1.0e8,
                        A_reg=1.0e-8, history=history)
    assert Ac.shape == (bs, history * n, history * n + d), Ac.shape
    assert jnp.allclose(Ac, Ac_ref, atol=1e-3, rtol=1e-3), (
        float(jnp.max(jnp.abs(Ac - Ac_ref))))

    print("KERNEL_OK")
</pallas_src>

<mosaic_0001>
module attributes {stable_mosaic.version = 11 : i64} {
  func.func @_gram_kernel(%arg0: i32, %arg1: i32, %arg2: memref<1x8x128xf32, #tpu.memory_space<vmem>>, %arg3: memref<1x8x128xf32, #tpu.memory_space<vmem>>, %arg4: memref<1x128x128xf32, #tpu.memory_space<vmem>>, %arg5: memref<1x16x128xf32, #tpu.memory_space<vmem>>, %arg6: memref<128x128xf32, #tpu.memory_space<vmem>>, %arg7: memref<16x128xf32, #tpu.memory_space<vmem>>) attributes {dimension_semantics = [#tpu.dimension_semantics<parallel>, #tpu.dimension_semantics<arbitrary>], iteration_bounds = array<i64: 2, 1>, scalar_prefetch = 0 : i64, scratch_operands = 2 : i64, tpu.core_type = #tpu.core_type<tc>, window_params = [{transform_indices = @transform_0, window_bounds = array<i64: 1, 8, 128>}, {transform_indices = @transform_1, window_bounds = array<i64: 1, 8, 128>}, {transform_indices = @transform_2, window_bounds = array<i64: 1, 128, 128>}, {transform_indices = @transform_3, window_bounds = array<i64: 1, 16, 128>}]} {
    %c0_i32 = arith.constant 0 : i32
    %0 = arith.cmpi eq, %arg1, %c0_i32 : i32
    %1 = arith.extui %0 : i1 to i32
    %c0_i32_0 = arith.constant 0 : i32
    %2 = arith.cmpi ne, %1, %c0_i32_0 : i32
    scf.if %2 {
      %cst_26 = arith.constant 0.000000e+00 : f32
      %30 = vector.broadcast %cst_26 : f32 to vector<128x128xf32>
      %c0_27 = arith.constant 0 : index
      %c0_28 = arith.constant 0 : index
      %c0_29 = arith.constant 0 : index
      %31 = vector.load %arg4[%c0_27, %c0_28, %c0_29] : memref<1x128x128xf32, #tpu.memory_space<vmem>>, vector<1x128x128xf32>
      %32 = vector.shape_cast %31 : vector<1x128x128xf32> to vector<128x128xf32>
      %33 = vector.shape_cast %30 : vector<128x128xf32> to vector<1x128x128xf32>
      tpu.vector_store %arg4[%c0_27, %c0_28, %c0_29], %33 {strides = array<i32>} : memref<1x128x128xf32, #tpu.memory_space<vmem>>, vector<1x128x128xf32>,
      %cst_30 = arith.constant 0.000000e+00 : f32
      %34 = vector.broadcast %cst_30 : f32 to vector<16x128xf32>
      %c0_31 = arith.constant 0 : index
      %c0_32 = arith.constant 0 : index
      %c0_33 = arith.constant 0 : index
      %35 = vector.load %arg5[%c0_31, %c0_32, %c0_33] : memref<1x16x128xf32, #tpu.memory_space<vmem>>, vector<1x16x128xf32>
      %36 = vector.shape_cast %35 : vector<1x16x128xf32> to vector<16x128xf32>
      %37 = vector.shape_cast %34 : vector<16x128xf32> to vector<1x16x128xf32>
      tpu.vector_store %arg5[%c0_31, %c0_32, %c0_33], %37 {strides = array<i32>} : memref<1x16x128xf32, #tpu.memory_space<vmem>>, vector<1x16x128xf32>,
      %cst_34 = arith.constant 0.000000e+00 : f32
      %38 = vector.broadcast %cst_34 : f32 to vector<112x128xf32>
      %c16 = arith.constant 16 : index
      %c0_35 = arith.constant 0 : index
      %39 = vector.load %arg6[%c16, %c0_35] : memref<128x128xf32, #tpu.memory_space<vmem>>, vector<112x128xf32>
      tpu.vector_store %arg6[%c16, %c0_35], %38 {strides = array<i32>} : memref<128x128xf32, #tpu.memory_space<vmem>>, vector<112x128xf32>,
    } else {
    }
    %c0 = arith.constant 0 : index
    %c0_1 = arith.constant 0 : index
    %c0_2 = arith.constant 0 : index
    %3 = vector.load %arg2[%c0, %c0_1, %c0_2] : memref<1x8x128xf32, #tpu.memory_space<vmem>>, vector<1x8x128xf32>
    %4 = vector.shape_cast %3 : vector<1x8x128xf32> to vector<8x128xf32>
    %c0_3 = arith.constant 0 : index
    %c0_4 = arith.constant 0 : index
    %c0_5 = arith.constant 0 : index
    %5 = vector.load %arg3[%c0_3, %c0_4, %c0_5] : memref<1x8x128xf32, #tpu.memory_space<vmem>>, vector<1x8x128xf32>
    %6 = vector.shape_cast %5 : vector<1x8x128xf32> to vector<8x128xf32>
    %7 = tpu.concatenate %4, %6 in 1 : vector<8x128xf32>, vector<8x128xf32> -> vector<8x256xf32>
    %c0_i32_6 = arith.constant 0 : i32
    %8 = arith.cmpi eq, %arg1, %c0_i32_6 : i32
    %9 = arith.extui %8 : i1 to i32
    %c0_i32_7 = arith.constant 0 : i32
    %10 = arith.cmpi ne, %9, %c0_i32_7 : i32
    scf.if %10 {
      %c128_i32 = arith.constant 128 : i32
      %30 = arith.muli %arg1, %c128_i32 : i32
      %31 = tpu.iota {dimensions = array<i32: 1>} : vector<1x128xi32>
      %32 = vector.broadcast %30 : i32 to vector<1x128xi32>
      %33 = arith.addi %32, %31 : vector<1x128xi32>
      %c14_i32 = arith.constant 14 : i32
      %34 = vector.broadcast %c14_i32 : i32 to vector<1x128xi32>
      %35 = arith.cmpi slt, %33, %34 : vector<1x128xi32>
      %36 = arith.extui %35 : vector<1x128xi1> to vector<1x128xi32>
      %37 = arith.sitofp %36 : vector<1x128xi32> to vector<1x128xf32>
      %38 = vector.extract_strided_slice %7 {offsets = [0, 0], sizes = [8, 128], strides = [1, 1]} : vector<8x256xf32> to vector<8x128xf32>
      %39 = vector.broadcast %37 : vector<1x128xf32> to vector<8x128xf32>
      %40 = arith.mulf %38, %39 : vector<8x128xf32>
      %c0_26 = arith.constant 0 : index
      %c0_27 = arith.constant 0 : index
      %41 = vector.load %arg6[%c0_26, %c0_27] : memref<128x128xf32, #tpu.memory_space<vmem>>, vector<8x128xf32>
      tpu.vector_store %arg6[%c0_26, %c0_27], %40 {strides = array<i32>} : memref<128x128xf32, #tpu.memory_space<vmem>>, vector<8x128xf32>,
      %42 = vector.extract_strided_slice %7 {offsets = [0, 1], sizes = [8, 128], strides = [1, 1]} : vector<8x256xf32> to vector<8x128xf32>
      %c0_28 = arith.constant 0 : index
      %c0_29 = arith.constant 0 : index
      %43 = vector.load %arg7[%c0_28, %c0_29] : memref<16x128xf32, #tpu.memory_space<vmem>>, vector<8x128xf32>
      tpu.vector_store %arg7[%c0_28, %c0_29], %42 {strides = array<i32>} : memref<16x128xf32, #tpu.memory_space<vmem>>, vector<8x128xf32>,
      %44 = vector.extract_strided_slice %7 {offsets = [0, 1], sizes = [8, 128], strides = [1, 1]} : vector<8x256xf32> to vector<8x128xf32>
      %45 = vector.broadcast %37 : vector<1x128xf32> to vector<8x128xf32>
      %46 = arith.mulf %44, %45 : vector<8x128xf32>
      %c8 = arith.constant 8 : index
      %c0_30 = arith.constant 0 : index
      %47 = vector.load %arg6[%c8, %c0_30] : memref<128x128xf32, #tpu.memory_space<vmem>>, vector<8x128xf32>
      tpu.vector_store %arg6[%c8, %c0_30], %46 {strides = array<i32>} : memref<128x128xf32, #tpu.memory_space<vmem>>, vector<8x128xf32>,
      %48 = vector.extract_strided_slice %7 {offsets = [0, 2], sizes = [8, 128], strides = [1, 1]} : vector<8x256xf32> to vector<8x128xf32>
      %c8_31 = arith.constant 8 : index
      %c0_32 = arith.constant 0 : index
      %49 = vector.load %arg7[%c8_31, %c0_32] : memref<16x128xf32, #tpu.memory_space<vmem>>, vector<8x128xf32>
      tpu.vector_store %arg7[%c8_31, %c0_32], %48 {strides = array<i32>} : memref<16x128xf32, #tpu.memory_space<vmem>>, vector<8x128xf32>,
    } else {
    }
    %true = arith.constant true
    %11 = arith.xori %8, %true : i1
    %12 = arith.extui %11 : i1 to i32
    %c0_i32_8 = arith.constant 0 : i32
    %13 = arith.cmpi ne, %12, %c0_i32_8 : i32
    scf.if %13 {
      %30 = vector.extract_strided_slice %7 {offsets = [0, 0], sizes = [8, 128], strides = [1, 1]} : vector<8x256xf32> to vector<8x128xf32>
      %c0_26 = arith.constant 0 : index
      %c0_27 = arith.constant 0 : index
      %31 = vector.load %arg6[%c0_26, %c0_27] : memref<128x128xf32, #tpu.memory_space<vmem>>, vector<8x128xf32>
      tpu.vector_store %arg6[%c0_26, %c0_27], %30 {strides = array<i32>} : memref<128x128xf32, #tpu.memory_space<vmem>>, vector<8x128xf32>,
      %32 = vector.extract_strided_slice %7 {offsets = [0, 1], sizes = [8, 128], strides = [1, 1]} : vector<8x256xf32> to vector<8x128xf32>
      %c0_28 = arith.constant 0 : index
      %c0_29 = arith.constant 0 : index
      %33 = vector.load %arg7[%c0_28, %c0_29] : memref<16x128xf32, #tpu.memory_space<vmem>>, vector<8x128xf32>
      tpu.vector_store %arg7[%c0_28, %c0_29], %32 {strides = array<i32>} : memref<16x128xf32, #tpu.memory_space<vmem>>, vector<8x128xf32>,
      %34 = vector.extract_strided_slice %7 {offsets = [0, 1], sizes = [8, 128], strides = [1, 1]} : vector<8x256xf32> to vector<8x128xf32>
      %c8 = arith.constant 8 : index
      %c0_30 = arith.constant 0 : index
      %35 = vector.load %arg6[%c8, %c0_30] : memref<128x128xf32, #tpu.memory_space<vmem>>, vector<8x128xf32>
      tpu.vector_store %arg6[%c8, %c0_30], %34 {strides = array<i32>} : memref<128x128xf32, #tpu.memory_space<vmem>>, vector<8x128xf32>,
      %36 = vector.extract_strided_slice %7 {offsets = [0, 2], sizes = [8, 128], strides = [1, 1]} : vector<8x256xf32> to vector<8x128xf32>
      %c8_31 = arith.constant 8 : index
      %c0_32 = arith.constant 0 : index
      %37 = vector.load %arg7[%c8_31, %c0_32] : memref<16x128xf32, #tpu.memory_space<vmem>>, vector<8x128xf32>
      tpu.vector_store %arg7[%c8_31, %c0_32], %36 {strides = array<i32>} : memref<16x128xf32, #tpu.memory_space<vmem>>, vector<8x128xf32>,
    } else {
    }
    %c0_9 = arith.constant 0 : index
    %c0_10 = arith.constant 0 : index
    %14 = vector.load %arg6[%c0_9, %c0_10] : memref<128x128xf32, #tpu.memory_space<vmem>>, vector<128x128xf32>
    %c0_11 = arith.constant 0 : index
    %c0_12 = arith.constant 0 : index
    %15 = vector.load %arg7[%c0_11, %c0_12] : memref<16x128xf32, #tpu.memory_space<vmem>>, vector<16x128xf32>
    %c0_13 = arith.constant 0 : index
    %c0_14 = arith.constant 0 : index
    %c0_15 = arith.constant 0 : index
    %16 = vector.load %arg4[%c0_13, %c0_14, %c0_15] : memref<1x128x128xf32, #tpu.memory_space<vmem>>, vector<1x128x128xf32>
    %17 = vector.shape_cast %16 : vector<1x128x128xf32> to vector<128x128xf32>
    %cst = arith.constant dense<0.000000e+00> : vector<128x128xf32>
    %18 = tpu.matmul %14, %14, %cst {dimension_numbers = #tpu.dot_dimension_numbers<[1], [1], [0], [0], [0, 0, 1, 0], [], []>} : vector<128x128xf32>, vector<128x128xf32>, vector<128x128xf32> -> vector<128x128xf32>
    %19 = arith.addf %17, %18 : vector<128x128xf32>
    %c0_16 = arith.constant 0 : index
    %c0_17 = arith.constant 0 : index
    %c0_18 = arith.constant 0 : index
    %20 = vector.load %arg4[%c0_16, %c0_17, %c0_18] : memref<1x128x128xf32, #tpu.memory_space<vmem>>, vector<1x128x128xf32>
    %21 = vector.shape_cast %20 : vector<1x128x128xf32> to vector<128x128xf32>
    %22 = vector.shape_cast %19 : vector<128x128xf32> to vector<1x128x128xf32>
    tpu.vector_store %arg4[%c0_16, %c0_17, %c0_18], %22 {strides = array<i32>} : memref<1x128x128xf32, #tpu.memory_space<vmem>>, vector<1x128x128xf32>,
    %c0_19 = arith.constant 0 : index
    %c0_20 = arith.constant 0 : index
    %c0_21 = arith.constant 0 : index
    %23 = vector.load %arg5[%c0_19, %c0_20, %c0_21] : memref<1x16x128xf32, #tpu.memory_space<vmem>>, vector<1x16x128xf32>
    %24 = vector.shape_cast %23 : vector<1x16x128xf32> to vector<16x128xf32>
    %cst_22 = arith.constant dense<0.000000e+00> : vector<16x128xf32>
    %25 = tpu.matmul %15, %14, %cst_22 {dimension_numbers = #tpu.dot_dimension_numbers<[1], [1], [0], [0], [0, 0, 1, 0], [], []>} : vector<16x128xf32>, vector<128x128xf32>, vector<16x128xf32> -> vector<16x128xf32>
    %26 = arith.addf %24, %25 : vector<16x128xf32>
    %c0_23 = arith.constant 0 : index
    %c0_24 = arith.constant 0 : index
    %c0_25 = arith.constant 0 : index
    %27 = vector.load %arg5[%c0_23, %c0_24, %c0_25] : memref<1x16x128xf32, #tpu.memory_space<vmem>>, vector<1x16x128xf32>
    %28 = vector.shape_cast %27 : vector<1x16x128xf32> to vector<16x128xf32>
    %29 = vector.shape_cast %26 : vector<16x128xf32> to vector<1x16x128xf32>
    tpu.vector_store %arg5[%c0_23, %c0_24, %c0_25], %29 {strides = array<i32>} : memref<1x16x128xf32, #tpu.memory_space<vmem>>, vector<1x16x128xf32>,
    return
  }
  func.func @transform_0(%arg0: i32, %arg1: i32) -> (i32, i32, i32) {
    %c0_i32 = arith.constant 0 : i32
    %c0_i32_0 = arith.constant 0 : i32
    return %arg0, %c0_i32, %arg1 : i32, i32, i32
  }
  func.func @transform_1(%arg0: i32, %arg1: i32) -> (i32, i32, i32) {
    %c1_i32 = arith.constant 1 : i32
    %0 = arith.addi %arg1, %c1_i32 : i32
    %c1_i32_0 = arith.constant 1 : i32
    %1 = arith.muli %0, %c1_i32_0 : i32
    %c0_i32 = arith.constant 0 : i32
    %c0_i32_1 = arith.constant 0 : i32
    return %arg0, %c0_i32, %1 : i32, i32, i32
  }
  func.func @transform_2(%arg0: i32, %arg1: i32) -> (i32, i32, i32) {
    %c0_i32 = arith.constant 0 : i32
    %c0_i32_0 = arith.constant 0 : i32
    %c0_i32_1 = arith.constant 0 : i32
    return %arg0, %c0_i32, %c0_i32_0 : i32, i32, i32
  }
  func.func @transform_3(%arg0: i32, %arg1: i32) -> (i32, i32, i32) {
    %c0_i32 = arith.constant 0 : i32
    %c0_i32_0 = arith.constant 0 : i32
    %c0_i32_1 = arith.constant 0 : i32
    return %arg0, %c0_i32, %c0_i32_0 : i32, i32, i32
  }
}

</mosaic_0001>

<llo_original>
// kernel: tpu_custom_call.1
$region0: #{tpu_custom_call.1}
  #allocation0 [shape = 'u32[]', space=smem, size = 0x4, offset = 0x4, fixed_abs, tag = 'smem constant byte address 0x4 - core index']
  #allocation1 [shape = 'u32[144,128]{1,0:T(1,128)}', space=vmem, size = 0x12000, scoped, tag = 'internal scratch']
  #allocation2 [shape = 'f32[128,128]{1,0:T(8,128)}', space=vmem, size = 0x10000, scoped, tag = 'scratch operand']
  #allocation3 [shape = 'f32[16,128]{1,0:T(8,128)}', space=vmem, size = 0x2000, scoped, tag = 'scratch operand']
  %s0 = inlined_call_operand.hbm [shape: f32[2,8,256], index: 0, kind: input, shape index: {}]
  %s1 = inlined_call_operand.hbm [shape: f32[2,8,256], index: 1, kind: input, shape index: {}]
  %s2 = inlined_call_operand.hbm [shape: f32[2,128,128], index: 2, kind: output, shape index: {0}]
  %s3 = inlined_call_operand.hbm [shape: f32[2,16,128], index: 3, kind: output, shape index: {1}]
  %4 = xla_tuple %s2, %s3
  %s5 = sld [smem:[#allocation0]]
  $region69: #{tpu_custom_call.1} parent=0
    _
  %s7 = ssub.s32 1, %s5
  %s8 = scalar_select 0, %s7, %s5
  $region1: #{tpu_custom_call.1} parent=0
    #allocation4 [shape = 'u8[8192]{0}', space=vmem, size = 0x2000, scoped, tag = 'input window, operand 0']
    #allocation5 [shape = 's32[2]{0}', space=sflag, size = 0x8, scoped, tag = 'scoped memory for tpu_custom_call.1']
    #allocation6 [shape = 's32[2]{0}', space=sflag, size = 0x8, scoped, tag = 'scoped memory for tpu_custom_call.1']
    #allocation7 [shape = 'u8[8192]{0}', space=vmem, size = 0x2000, scoped, tag = 'input window, operand 1']
    #allocation8 [shape = 's32[2]{0}', space=sflag, size = 0x8, scoped, tag = 'scoped memory for tpu_custom_call.1']
    #allocation9 [shape = 'u8[131072]{0}', space=vmem, size = 0x20000, scoped, tag = 'output window, operand 0']
    #allocation10 [shape = 'u8[16384]{0}', space=vmem, size = 0x4000, scoped, tag = 'output window, operand 1']
    #allocation11 [shape = 's32[2]{0}', space=sflag, size = 0x8, scoped, tag = 'scoped memory for tpu_custom_call.1']
    %9 = vsyncpa [#allocation5], 0
    %s10 = scalar_lea.sflag [#allocation5], 1
    %11 = vsyncpa %s10, 0
    %12 = vsyncpa [#allocation8], 0
    %s13 = scalar_lea.sflag [#allocation8], 1
    %14 = vsyncpa %s13, 0
    %15 = vsyncpa [#allocation6], 0
    %s16 = scalar_lea.sflag [#allocation6], 1
    %17 = vsyncpa %s16, 0
    %18 = vsyncpa [#allocation11], 0
    %s19 = scalar_lea.sflag [#allocation11], 1
    %20 = vsyncpa %s19, 0
    loop: start=0, step=1, limit=4
    $region2: #{tpu_custom_call.1} parent=1 // loop_pre_header
      _
    $region3: #{tpu_custom_call.1} parent=1 // loop_header
      %s22 = sphi 0, %s26
      %p23 = scmp.ge.s32.totalorder %s22, 4
      %s29 = sphi 0, %s41
      %s30 = sphi 0, %s37
      %s31 = sphi 0, %s29
      %s32 = sphi 0, %s30
      %s33 = sphi 0, %s31
      %s34 = sphi 0, %s32
      %s46 = sphi 0, %s48
      %s49 = sphi 0, %s46
      %s50 = sphi 0, %s49
      %s66 = sphi 0, %s50
      %s76 = sphi 0, %s78
      %s79 = sphi 0, %s76
      %s80 = sphi 0, %s79
      %s96 = sphi 0, %s80
      %s102 = sphi 0, %s104
      %s105 = sphi 0, %s102
      %s106 = sphi 0, %s105
      %s122 = sphi 0, %s106
      %s128 = sphi 0, %s130
      %s131 = sphi 0, %s128
      %s132 = sphi 0, %s131
      %s148 = sphi 0, %s132
    $region4: #{tpu_custom_call.1} parent=1 // loop_header_branch
      %25 = sbr.rel (%p23) target = $region8
    $region5: #{tpu_custom_call.1} parent=1 // loop_body
      %s27 = ssub.s32 %s22, 1
      %s28 = ssub.s32 %s22, 2
      %s35 = sadd.s32 1, %s30
      %p36 = scmp.ge.s32.totalorder %s35, 1
      %s37 = scalar_select %p36, 0, %s35
      %s38 = sadd.s32 1, %s29
      %s39 = scalar_select %p36, %s38, %s29
      %p40 = scmp.ge.s32.totalorder %s39, 2
      %s41 = scalar_select %p40, 0, %s39
      %s42 = ssub.s32 %s29, %s41
      %s43 = ssub.s32 %s30, %s37
      %s44 = sor.u32 %s42, %s43
      %p45 = scmp.eq.s32.totalorder %s44, 0
      %s47 = sadd.s32 %s46, 1
      %s48 = scalar_select %p45, %s46, %s47
      %p51 = pneg %p45
      %p52 = scmp.eq.s32.totalorder %s22, 1
      %p53 = por %p51, %p52
      %p54 = scmp.ne.s32.totalorder %s46, %s49
      %p55 = scmp.eq.s32.totalorder %s22, 0
      %p56 = por %p54, %p55
      %p57 = scmp.ne.s32.totalorder %s46, %s49
      %p58 = scmp.eq.s32.totalorder %s27, 1
      %p59 = por %p57, %p58
      %p60 = scmp.ne.s32.totalorder %s49, %s50
      %p61 = scmp.eq.s32.totalorder %s27, 0
      %p62 = por %p60, %p61
      %p63 = scmp.ne.s32.totalorder %s49, %s50
      %p64 = scmp.eq.s32.totalorder %s28, 1
      %p65 = por %p63, %p64
      %p67 = scmp.ne.s32.totalorder %s50, %s66
      %p68 = scmp.eq.s32.totalorder %s28, 0
      %p69 = por %p67, %p68
      %s70 = sadd.s32 %s30, 1
      %s71 = sadd.s32 %s37, 1
      %s72 = ssub.s32 %s29, %s41
      %s73 = ssub.s32 %s70, %s71
      %s74 = sor.u32 %s72, %s73
      %p75 = scmp.eq.s32.totalorder %s74, 0
      %s77 = sadd.s32 %s76, 1
      %s78 = scalar_select %p75, %s76, %s77
      %p81 = pneg %p75
      %p82 = scmp.eq.s32.totalorder %s22, 1
      %p83 = por %p81, %p82
      %p84 = scmp.ne.s32.totalorder %s76, %s79
      %p85 = scmp.eq.s32.totalorder %s22, 0
      %p86 = por %p84, %p85
      %p87 = scmp.ne.s32.totalorder %s76, %s79
      %p88 = scmp.eq.s32.totalorder %s27, 1
      %p89 = por %p87, %p88
      %p90 = scmp.ne.s32.totalorder %s79, %s80
      %p91 = scmp.eq.s32.totalorder %s27, 0
      %p92 = por %p90, %p91
      %p93 = scmp.ne.s32.totalorder %s79, %s80
      %p94 = scmp.eq.s32.totalorder %s28, 1
      %p95 = por %p93, %p94
      %p97 = scmp.ne.s32.totalorder %s80, %s96
      %p98 = scmp.eq.s32.totalorder %s28, 0
      %p99 = por %p97, %p98
      %s100 = ssub.s32 %s29, %s41
      %p101 = scmp.eq.s32.totalorder %s100, 0
      %s103 = sadd.s32 %s102, 1
      %s104 = scalar_select %p101, %s102, %s103
      %p107 = pneg %p101
      %p108 = scmp.eq.s32.totalorder %s22, 1
      %p109 = por %p107, %p108
      %p110 = scmp.ne.s32.totalorder %s102, %s105
      %p111 = scmp.eq.s32.totalorder %s22, 0
      %p112 = por %p110, %p111
      %p113 = scmp.ne.s32.totalorder %s102, %s105
      %p114 = scmp.eq.s32.totalorder %s27, 1
      %p115 = por %p113, %p114
      %p116 = scmp.ne.s32.totalorder %s105, %s106
      %p117 = scmp.eq.s32.totalorder %s27, 0
      %p118 = por %p116, %p117
      %p119 = scmp.ne.s32.totalorder %s105, %s106
      %p120 = scmp.eq.s32.totalorder %s28, 1
      %p121 = por %p119, %p120
      %p123 = scmp.ne.s32.totalorder %s106, %s122
      %p124 = scmp.eq.s32.totalorder %s28, 0
      %p125 = por %p123, %p124
      %s126 = ssub.s32 %s29, %s41
      %p127 = scmp.eq.s32.totalorder %s126, 0
      %s129 = sadd.s32 %s128, 1
      %s130 = scalar_select %p127, %s128, %s129
      %p133 = pneg %p127
      %p134 = scmp.eq.s32.totalorder %s22, 1
      %p135 = por %p133, %p134
      %p136 = scmp.ne.s32.totalorder %s128, %s131
      %p137 = scmp.eq.s32.totalorder %s22, 0
      %p138 = por %p136, %p137
      %p139 = scmp.ne.s32.totalorder %s128, %s131
      %p140 = scmp.eq.s32.totalorder %s27, 1
      %p141 = por %p139, %p140
      %p142 = scmp.ne.s32.totalorder %s131, %s132
      %p143 = scmp.eq.s32.totalorder %s27, 0
      %p144 = por %p142, %p143
      %p145 = scmp.ne.s32.totalorder %s131, %s132
      %p146 = scmp.eq.s32.totalorder %s28, 1
      %p147 = por %p145, %p146
      %p149 = scmp.ne.s32.totalorder %s132, %s148
      %p150 = scmp.eq.s32.totalorder %s28, 0
      %p151 = por %p149, %p150
      %p152 = scmp.le.s32.totalorder 1, %s22
      %p153 = scmp.lt.s32.totalorder %s22, 3
      %p154 = pnand %p152, %p153
      %p155 = pneg %p154
      // Predicated region
      $region9: #{tpu_custom_call.1} parent=5 // pred_check
        _
      $region10: #{tpu_custom_call.1} parent=5 // pred_check_branch
        %157 = sbr.rel (%p154) target = $region12
      $region11: #{tpu_custom_call.1} parent=5 // pred_region
        %s158 = ssub.s32 %s22, 1
      $region12: #{tpu_custom_call.1} parent=5 // pred_fallthru
        _
      %p159 = scmp.lt.s32.totalorder %s22, 2
      // Predicated region
      $region13: #{tpu_custom_call.1} parent=5 // pred_check
        %p160 = pneg %p159
      $region14: #{tpu_custom_call.1} parent=5 // pred_check_branch
        %162 = sbr.rel (%p160) target = $region16
      $region15: #{tpu_custom_call.1} parent=5 // pred_region
        // Predicated region
        $region17: #{tpu_custom_call.1} parent=15 // pred_check
          %p163 = pneg %p56
        $region18: #{tpu_custom_call.1} parent=15 // pred_check_branch
          %165 = sbr.rel (%p163) target = $region20
        $region19: #{tpu_custom_call.1} parent=15 // pred_region
          %s166 = sand.u32 %s46, 1
          %s167 = scalar_lea.sflag [#allocation5], %s166
          %s168 = sand.u32 %s46, 1
          %s169 = smul.addr %s168, 8
          %s170 = scalar_lea.vmem [#allocation4], %s169
          %s172 = ssub.s32 128, 128
          %173 = vsyncadd %s167, %s172
          %s174 = smul.addr %s29, 2
          %s175 = sadd.s32 %s30, %s174
          %s176 = smul.addr %s175, 128
          %s177 = scalar_lea.hbm %s0, %s176
          %s179 = sshll.u32 %s170, 4
          %s180 = int_to_ptr.vmem [resolvable:$true] %s179
          %182 = dma.hbm_to_vmem [thread:$0]  %s177, 128, %s180, %s167
        $region20: #{tpu_custom_call.1} parent=15 // pred_fallthru
          _
        // Predicated region
        $region21: #{tpu_custom_call.1} parent=15 // pred_check
          %p183 = pneg %p86
        $region22: #{tpu_custom_call.1} parent=15 // pred_check_branch
          %185 = sbr.rel (%p183) target = $region24
        $region23: #{tpu_custom_call.1} parent=15 // pred_region
          %s186 = sand.u32 %s76, 1
          %s187 = scalar_lea.sflag [#allocation8], %s186
          %s188 = sand.u32 %s76, 1
          %s189 = smul.addr %s188, 8
          %s190 = scalar_lea.vmem [#allocation7], %s189
          %s191 = sadd.s32 %s30, 1
          %s193 = ssub.s32 128, 128
          %194 = vsyncadd %s187, %s193
          %s195 = smul.addr %s29, 2
          %s196 = sadd.s32 %s191, %s195
          %s197 = smul.addr %s196, 128
          %s198 = scalar_lea.hbm %s1, %s197
          %s200 = sshll.u32 %s190, 4
          %s201 = int_to_ptr.vmem [resolvable:$true] %s200
          %203 = dma.hbm_to_vmem [thread:$0]  %s198, 128, %s201, %s187
        $region24: #{tpu_custom_call.1} parent=15 // pred_fallthru
          _
      $region16: #{tpu_custom_call.1} parent=5 // pred_fallthru
        _
      %p204 = scmp.le.s32.totalorder 1, %s22
      %p205 = scmp.lt.s32.totalorder %s22, 3
      %p206 = pnand %p204, %p205
      %p207 = pneg %p206
      // Predicated region
      $region25: #{tpu_custom_call.1} parent=5 // pred_check
        _
      $region26: #{tpu_custom_call.1} parent=5 // pred_check_branch
        %209 = sbr.rel (%p206) target = $region28
      $region27: #{tpu_custom_call.1} parent=5 // pred_region
        %s210 = ssub.s32 %s22, 1
        %s211 = sand.u32 %s49, 1
        %s212 = scalar_lea.sflag [#allocation5], %s211
        %s213 = sand.u32 %s49, 1
        %s214 = smul.addr %s213, 8
        %s215 = scalar_lea.vmem [#allocation4], %s214
        // Predicated region
        $region29: #{tpu_custom_call.1} parent=27 // pred_check
          %p216 = pneg %p62
        $region30: #{tpu_custom_call.1} parent=27 // pred_check_branch
          %218 = sbr.rel (%p216) target = $region32
        $region31: #{tpu_custom_call.1} parent=27 // pred_region
          %219 = dma.done %s212, 128
        $region32: #{tpu_custom_call.1} parent=27 // pred_fallthru
          _
        %s220 = sand.u32 %s79, 1
        %s221 = scalar_lea.sflag [#allocation8], %s220
        %s222 = sand.u32 %s79, 1
        %s223 = smul.addr %s222, 8
        %s224 = scalar_lea.vmem [#allocation7], %s223
        // Predicated region
        $region33: #{tpu_custom_call.1} parent=27 // pred_check
          %p225 = pneg %p92
        $region34: #{tpu_custom_call.1} parent=27 // pred_check_branch
          %227 = sbr.rel (%p225) target = $region36
        $region35: #{tpu_custom_call.1} parent=27 // pred_region
          %228 = dma.done %s221, 128
        $region36: #{tpu_custom_call.1} parent=27 // pred_fallthru
          _
        %s229 = sand.u32 %s49, 1
        %s230 = scalar_lea.sflag [#allocation5], %s229
        %s231 = sand.u32 %s49, 1
        %s232 = smul.addr %s231, 8
        %s233 = scalar_lea.vmem [#allocation4], %s232
        %p234 = pneg %p62
        %p235 = pneg %p59
        %s236 = sand.u32 %s79, 1
        %s237 = scalar_lea.sflag [#allocation8], %s236
        %s238 = sand.u32 %s79, 1
        %s239 = smul.addr %s238, 8
        %s240 = scalar_lea.vmem [#allocation7], %s239
        %p241 = pneg %p92
        %p242 = pneg %p89
        %p243 = pneg %p118
        %p244 = pneg %p115
        %s245 = sand.u32 %s105, 1
        %s246 = scalar_lea.sflag [#allocation6], %s245
        %s247 = sand.u32 %s105, 1
        %s248 = smul.addr %s247, 128
        %s249 = scalar_lea.vmem [#allocation9], %s248
        %p250 = pneg %p144
        %p251 = pneg %p141
        %s252 = sand.u32 %s131, 1
        %s253 = scalar_lea.sflag [#allocation11], %s252
        %s254 = sand.u32 %s131, 1
        %s255 = smul.addr %s254, 16
        %s256 = scalar_lea.vmem [#allocation10], %s255
        %s257 = sadd.s32 %s32, 1
        %p258 = scmp.eq.s32.totalorder %s32, 0
        // Predicated region
        $region37: #{tpu_custom_call.1} parent=27 // pred_check
          %p259 = pneg %p258
        $region38: #{tpu_custom_call.1} parent=27 // pred_check_branch
          %261 = sbr.rel (%p259) target = $region40
        $region39: #{tpu_custom_call.1} parent=27 // pred_region
          %262 = vst [vmem:[%s249] sm:$0xff] 0.0
          %263 = vst [vmem:[%s249 + $0x8] sm:$0xff] 0.0
          %264 = vst [vmem:[%s249 + $0x10] sm:$0xff] 0.0
          %265 = vst [vmem:[%s249 + $0x18] sm:$0xff] 0.0
          %266 = vst [vmem:[%s249 + $0x20] sm:$0xff] 0.0
          %267 = vst [vmem:[%s249 + $0x28] sm:$0xff] 0.0
          %268 = vst [vmem:[%s249 + $0x30] sm:$0xff] 0.0
          %269 = vst [vmem:[%s249 + $0x38] sm:$0xff] 0.0
          %270 = vst [vmem:[%s249 + $0x40] sm:$0xff] 0.0
          %271 = vst [vmem:[%s249 + $0x48] sm:$0xff] 0.0
          %272 = vst [vmem:[%s249 + $0x50] sm:$0xff] 0.0
          %273 = vst [vmem:[%s249 + $0x58] sm:$0xff] 0.0
          %274 = vst [vmem:[%s249 + $0x60] sm:$0xff] 0.0
          %275 = vst [vmem:[%s249 + $0x68] sm:$0xff] 0.0
          %276 = vst [vmem:[%s249 + $0x70] sm:$0xff] 0.0
          %277 = vst [vmem:[%s249 + $0x78] sm:$0xff] 0.0
          %278 = vst [vmem:[%s256] sm:$0xff] 0.0
          %279 = vst [vmem:[%s256 + $0x8] sm:$0xff] 0.0
          %280 = vst [vmem:[#allocation2 + $0x10] sm:$0xff] 0.0
          %281 = vst [vmem:[#allocation2 + $0x18] sm:$0xff] 0.0
          %282 = vst [vmem:[#allocation2 + $0x20] sm:$0xff] 0.0
          %283 = vst [vmem:[#allocation2 + $0x28] sm:$0xff] 0.0
          %284 = vst [vmem:[#allocation2 + $0x30] sm:$0xff] 0.0
          %285 = vst [vmem:[#allocation2 + $0x38] sm:$0xff] 0.0
          %286 = vst [vmem:[#allocation2 + $0x40] sm:$0xff] 0.0
          %287 = vst [vmem:[#allocation2 + $0x48] sm:$0xff] 0.0
          %288 = vst [vmem:[#allocation2 + $0x50] sm:$0xff] 0.0
          %289 = vst [vmem:[#allocation2 + $0x58] sm:$0xff] 0.0
          %290 = vst [vmem:[#allocation2 + $0x60] sm:$0xff] 0.0
          %291 = vst [vmem:[#allocation2 + $0x68] sm:$0xff] 0.0
          %292 = vst [vmem:[#allocation2 + $0x70] sm:$0xff] 0.0
          %293 = vst [vmem:[#allocation2 + $0x78] sm:$0xff] 0.0
        $region40: #{tpu_custom_call.1} parent=27 // pred_fallthru
          _
        %v294 = vld [vmem:[%s215] sm:$0xff]
        %v295 = vld [vmem:[%s224] sm:$0xff]
        // Predicated region
        $region41: #{tpu_custom_call.1} parent=27 // pred_check
          %p296 = pneg %p258
        $region42: #{tpu_custom_call.1} parent=27 // pred_check_branch
          %298 = sbr.rel (%p296) target = $region44
        $region43: #{tpu_custom_call.1} parent=27 // pred_region
          %s299 = smul.u32 %s32, 128
          %v300 = vlaneseq
          %v301 = vand.u32 %v300, 127
          %v302 = vstv %s299
          %v303 = vadd.s32 %v302, %v301
          %vm304 = vcmp.lt.s32.totalorder %v303, 14
          %v305 = vsel %vm304, 1, 0
          %v306 = vcvt.s32.f32 %v305
          %v307 = vmul.f32 %v294, %v306
          %308 = vst [vmem:[#allocation2] sm:$0xff] %v307
          %311 = vrot.lane.b32.xlu0 %v294, 127
          %v312 = vpop.permute.xlu0 %311
          %313 = vrot.lane.b32.xlu0 %v295, 127
          %v314 = vpop.permute.xlu0 %313
          %vm315 = vcmask 1039360
          %v316 = vsel %vm315, %v312, %v314
          %318 = vst [vmem:[#allocation3] sm:$0xff] %v316
          %320 = vrot.lane.b32.xlu0 %v306, 1
          %v321 = vpop.permute.xlu0 %320
          %v323 = vmul.f32 %v294, %v321
          %v324 = vmul.f32 %v295, %v321
          %327 = vrot.lane.b32.xlu0 %v323, 127
          %v328 = vpop.permute.xlu0 %327
          %329 = vrot.lane.b32.xlu0 %v324, 127
          %v330 = vpop.permute.xlu0 %329
          %v331 = vsel %vm315, %v328, %v330
          %333 = vst [vmem:[#allocation2 + $0x8] sm:$0xff] %v331
          %334 = vrot.lane.b32.xlu0 %v294, 126
          %v335 = vpop.permute.xlu0 %334
          %336 = vrot.lane.b32.xlu0 %v295, 126
          %v337 = vpop.permute.xlu0 %336
          %vm338 = vcmask 1031168
          %v339 = vsel %vm338, %v335, %v337
          %341 = vst [vmem:[#allocation3 + $0x8] sm:$0xff] %v339
        $region44: #{tpu_custom_call.1} parent=27 // pred_fallthru
          _
        %p342 = scmp.ne.s32.totalorder %s32, 0
        // Predicated region
        $region45: #{tpu_custom_call.1} parent=27 // pred_check
          %p343 = pneg %p342
        $region46: #{tpu_custom_call.1} parent=27 // pred_check_branch
          %345 = sbr.rel (%p343) target = $region48
        $region47: #{tpu_custom_call.1} parent=27 // pred_region
          %346 = vst [vmem:[#allocation2] sm:$0xff] %v294
          %349 = vrot.lane.b32.xlu0 %v294, 127
          %v350 = vpop.permute.xlu0 %349
          %351 = vrot.lane.b32.xlu0 %v295, 127
          %v352 = vpop.permute.xlu0 %351
          %vm353 = vcmask 1039360
          %v354 = vsel %vm353, %v350, %v352
          %356 = vst [vmem:[#allocation3] sm:$0xff] %v354
          %357 = vst [vmem:[#allocation2 + $0x8] sm:$0xff] %v354
          %358 = vrot.lane.b32.xlu0 %v294, 126
          %v359 = vpop.permute.xlu0 %358
          %360 = vrot.lane.b32.xlu0 %v295, 126
          %v361 = vpop.permute.xlu0 %360
          %vm362 = vcmask 1031168
          %v363 = vsel %vm362, %v359, %v361
          %365 = vst [vmem:[#allocation3 + $0x8] sm:$0xff] %v363
        $region48: #{tpu_custom_call.1} parent=27 // pred_fallthru
          _
        %v366 = vld [vmem:[#allocation2] sm:$0xff]
        %v367 = vld [vmem:[#allocation2 + $0x8] sm:$0xff]
        %v368 = vld [vmem:[#allocation2 + $0x10] sm:$0xff]
        %v369 = vld [vmem:[#allocation2 + $0x18] sm:$0xff]
        %v370 = vld [vmem:[#allocation2 + $0x20] sm:$0xff]
        %v371 = vld [vmem:[#allocation2 + $0x28] sm:$0xff]
        %v372 = vld [vmem:[#allocation2 + $0x30] sm:$0xff]
        %v373 = vld [vmem:[#allocation2 + $0x38] sm:$0xff]
        %v374 = vld [vmem:[#allocation2 + $0x40] sm:$0xff]
        %v375 = vld [vmem:[#allocation2 + $0x48] sm:$0xff]
        %v376 = vld [vmem:[#allocation2 + $0x50] sm:$0xff]
        %v377 = vld [vmem:[#allocation2 + $0x58] sm:$0xff]
        %v378 = vld [vmem:[#allocation2 + $0x60] sm:$0xff]
        %v379 = vld [vmem:[#allocation2 + $0x68] sm:$0xff]
        %v380 = vld [vmem:[#allocation2 + $0x70] sm:$0xff]
        %v381 = vld [vmem:[#allocation2 + $0x78] sm:$0xff]
        %v382 = vld [vmem:[#allocation3] sm:$0xff]
        %v383 = vld [vmem:[#allocation3 + $0x8] sm:$0xff]
        %v384 = vld [vmem:[%s249] sm:$0xff]
        %v385 = vld [vmem:[%s249 + $0x8] sm:$0xff]
        %v386 = vld [vmem:[%s249 + $0x10] sm:$0xff]
        %v387 = vld [vmem:[%s249 + $0x18] sm:$0xff]
        %v388 = vld [vmem:[%s249 + $0x20] sm:$0xff]
        %v389 = vld [vmem:[%s249 + $0x28] sm:$0xff]
        %v390 = vld [vmem:[%s249 + $0x30] sm:$0xff]
        %v391 = vld [vmem:[%s249 + $0x38] sm:$0xff]
        %v392 = vld [vmem:[%s249 + $0x40] sm:$0xff]
        %v393 = vld [vmem:[%s249 + $0x48] sm:$0xff]
        %v394 = vld [vmem:[%s249 + $0x50] sm:$0xff]
        %v395 = vld [vmem:[%s249 + $0x58] sm:$0xff]
        %v396 = vld [vmem:[%s249 + $0x60] sm:$0xff]
        %v397 = vld [vmem:[%s249 + $0x68] sm:$0xff]
        %v398 = vld [vmem:[%s249 + $0x70] sm:$0xff]
        %v399 = vld [vmem:[%s249 + $0x78] sm:$0xff]
        %400 = vmatprep.subr.mxu0 0.0
        %401 = vmatpush1.xpose.msra.mxu0 %v366
        %402 = vmatprep.subr.mxu0 0.0
        %403 = vmatpush1.xpose.msra.mxu0 %v367
        %404 = vmatprep.subr.mxu0 0.0
        %405 = vmatpush1.xpose.msra.mxu0 %v368
        %406 = vmatprep.subr.mxu0 0.0
        %407 = vmatpush1.xpose.msra.mxu0 %v369
        %408 = vmatprep.subr.mxu0 0.0
        %409 = vmatpush1.xpose.msra.mxu0 %v370
        %410 = vmatprep.subr.mxu0 0.0
        %411 = vmatpush1.xpose.msra.mxu0 %v371
        %412 = vmatprep.subr.mxu0 0.0
        %413 = vmatpush1.xpose.msra.mxu0 %v372
        %414 = vmatprep.subr.mxu0 0.0
        %415 = vmatpush1.xpose.msra.mxu0 %v373
        %416 = vmatprep.subr.mxu0 0.0
        %417 = vmatpush1.xpose.msra.mxu0 %v374
        %418 = vmatprep.subr.mxu0 0.0
        %419 = vmatpush1.xpose.msra.mxu0 %v375
        %420 = vmatprep.subr.mxu0 0.0
        %421 = vmatpush1.xpose.msra.mxu0 %v376
        %422 = vmatprep.subr.mxu0 0.0
        %423 = vmatpush1.xpose.msra.mxu0 %v377
        %424 = vmatprep.subr.mxu0 0.0
        %425 = vmatpush1.xpose.msra.mxu0 %v378
        %426 = vmatprep.subr.mxu0 0.0
        %427 = vmatpush1.xpose.msra.mxu0 %v379
        %428 = vmatprep.subr.mxu0 0.0
        %429 = vmatpush1.xpose.msra.mxu0 %v380
        %430 = vmatprep.subr.mxu0 0.0
        %431 = vmatpush1.xpose.msra.mxu0 %v381
        %432 = vmatprep.subr.mxu0 0.0
        %433 = vmatpush1.xpose.msra.mxu0 0.0
        %434 = vmatprep.subr.mxu0 0.0
        %435 = vmatpush1.xpose.msra.mxu0 0.0
        %436 = vmatprep.subr.mxu0 0.0
        %437 = vmatpush1.xpose.msra.mxu0 0.0
        %438 = vmatprep.subr.mxu0 0.0
        %439 = vmatpush1.xpose.msra.mxu0 0.0
        %440 = vmatprep.subr.mxu0 0.0
        %441 = vmatpush1.xpose.msra.mxu0 0.0
        %442 = vmatprep.subr.mxu0 0.0
        %443 = vmatpush1.xpose.msra.mxu0 0.0
        %444 = vmatprep.subr.mxu0 0.0
        %445 = vmatpush1.xpose.msra.mxu0 0.0
        %446 = vmatprep.subr.mxu0 0.0
        %447 = vmatpush1.xpose.msra.mxu0 0.0
        %448 = vmatprep.subr.mxu0 0.0
        %449 = vmatpush1.xpose.msra.mxu0 0.0
        %450 = vmatprep.subr.mxu0 0.0
        %451 = vmatpush1.xpose.msra.mxu0 0.0
        %452 = vmatprep.subr.mxu0 0.0
        %453 = vmatpush1.xpose.msra.mxu0 0.0
        %454 = vmatprep.subr.mxu0 0.0
        %455 = vmatpush1.xpose.msra.mxu0 0.0
        %456 = vmatprep.subr.mxu0 0.0
        %457 = vmatpush1.xpose.msra.mxu0 0.0
        %458 = vmatprep.subr.mxu0 0.0
        %459 = vmatpush1.xpose.msra.mxu0 0.0
        %460 = vmatprep.subr.mxu0 0.0
        %461 = vmatpush1.xpose.msra.mxu0 0.0
        %462 = vmatprep.subr.mxu0 0.0
        %463 = vmatpush1.xpose.msra.mxu0 0.0
        %464 = vmatprep.mubr.f32.mxu0 0.0
        %465 = vmatmul.mubr.f32.gmra.mrb[0].mxu0 %v366
        %v466 = vpop.f32.mrb[0].mxu0
        %v467 = vadd.f32 0.0, %v466
        %v468 = vpop.f32.mrb[0].mxu0
        %469 = vmatprep.mubr.f32.mxu0 0.0
        %470 = vmatmul.mubr.f32.gmra.mrb[0].mxu0 %v367
        %v471 = vpop.f32.mrb[0].mxu0
        %v472 = vadd.f32 0.0, %v471
        %v473 = vpop.f32.mrb[0].mxu0
        %474 = vmatprep.mubr.f32.mxu0 0.0
        %475 = vmatmul.mubr.f32.gmra.mrb[0].mxu0 %v368
        %v476 = vpop.f32.mrb[0].mxu0
        %v477 = vadd.f32 0.0, %v476
        %v478 = vpop.f32.mrb[0].mxu0
        %479 = vmatprep.mubr.f32.mxu0 0.0
        %480 = vmatmul.mubr.f32.gmra.mrb[0].mxu0 %v369
        %v481 = vpop.f32.mrb[0].mxu0
        %v482 = vadd.f32 0.0, %v481
        %v483 = vpop.f32.mrb[0].mxu0
        %484 = vmatprep.mubr.f32.mxu0 0.0
        %485 = vmatmul.mubr.f32.gmra.mrb[0].mxu0 %v370
        %v486 = vpop.f32.mrb[0].mxu0
        %v487 = vadd.f32 0.0, %v486
        %v488 = vpop.f32.mrb[0].mxu0
        %489 = vmatprep.mubr.f32.mxu0 0.0
        %490 = vmatmul.mubr.f32.gmra.mrb[0].mxu0 %v371
        %v491 = vpop.f32.mrb[0].mxu0
        %v492 = vadd.f32 0.0, %v491
        %v493 = vpop.f32.mrb[0].mxu0
        %494 = vmatprep.mubr.f32.mxu0 0.0
        %495 = vmatmul.mubr.f32.gmra.mrb[0].mxu0 %v372
        %v496 = vpop.f32.mrb[0].mxu0
        %v497 = vadd.f32 0.0, %v496
        %v498 = vpop.f32.mrb[0].mxu0
        %499 = vmatprep.mubr.f32.mxu0 0.0
        %500 = vmatmul.mubr.f32.gmra.mrb[0].mxu0 %v373
        %v501 = vpop.f32.mrb[0].mxu0
        %v502 = vadd.f32 0.0, %v501
        %v503 = vpop.f32.mrb[0].mxu0
        %504 = vmatprep.mubr.f32.mxu0 0.0
        %505 = vmatmul.mubr.f32.gmra.mrb[0].mxu0 %v374
        %v506 = vpop.f32.mrb[0].mxu0
        %v507 = vadd.f32 0.0, %v506
        %v508 = vpop.f32.mrb[0].mxu0
        %509 = vmatprep.mubr.f32.mxu0 0.0
        %510 = vmatmul.mubr.f32.gmra.mrb[0].mxu0 %v375
        %v511 = vpop.f32.mrb[0].mxu0
        %v512 = vadd.f32 0.0, %v511
        %v513 = vpop.f32.mrb[0].mxu0
        %514 = vmatprep.mubr.f32.mxu0 0.0
        %515 = vmatmul.mubr.f32.gmra.mrb[0].mxu0 %v376
        %v516 = vpop.f32.mrb[0].mxu0
        %v517 = vadd.f32 0.0, %v516
        %v518 = vpop.f32.mrb[0].mxu0
        %519 = vmatprep.mubr.f32.mxu0 0.0
        %520 = vmatmul.mubr.f32.gmra.mrb[0].mxu0 %v377
        %v521 = vpop.f32.mrb[0].mxu0
        %v522 = vadd.f32 0.0, %v521
        %v523 = vpop.f32.mrb[0].mxu0
        %524 = vmatprep.mubr.f32.mxu0 0.0
        %525 = vmatmul.mubr.f32.gmra.mrb[0].mxu0 %v378
        %v526 = vpop.f32.mrb[0].mxu0
        %v527 = vadd.f32 0.0, %v526
        %v528 = vpop.f32.mrb[0].mxu0
        %529 = vmatprep.mubr.f32.mxu0 0.0
        %530 = vmatmul.mubr.f32.gmra.mrb[0].mxu0 %v379
        %v531 = vpop.f32.mrb[0].mxu0
        %v532 = vadd.f32 0.0, %v531
        %v533 = vpop.f32.mrb[0].mxu0
        %534 = vmatprep.mubr.f32.mxu0 0.0
        %535 = vmatmul.mubr.f32.gmra.mrb[0].mxu0 %v380
        %v536 = vpop.f32.mrb[0].mxu0
        %v537 = vadd.f32 0.0, %v536
        %v538 = vpop.f32.mrb[0].mxu0
        %539 = vmatprep.mubr.f32.mxu0 0.0
        %540 = vmatmul.mubr.f32.gmra.mrb[0].mxu0 %v381
        %v541 = vpop.f32.mrb[0].mxu0
        %v542 = vadd.f32 0.0, %v541
        %v543 = vpop.f32.mrb[0].mxu0
        %544 = vdwg.mxu0
        %v545 = vadd.f32 %v384, %v467
        %v546 = vadd.f32 %v385, %v472
        %v547 = vadd.f32 %v386, %v477
        %v548 = vadd.f32 %v387, %v482
        %v549 = vadd.f32 %v388, %v487
        %v550 = vadd.f32 %v389, %v492
        %v551 = vadd.f32 %v390, %v497
        %v552 = vadd.f32 %v391, %v502
        %v553 = vadd.f32 %v392, %v507
        %v554 = vadd.f32 %v393, %v512
        %v555 = vadd.f32 %v394, %v517
        %v556 = vadd.f32 %v395, %v522
        %v557 = vadd.f32 %v396, %v527
        %v558 = vadd.f32 %v397, %v532
        %v559 = vadd.f32 %v398, %v537
        %v560 = vadd.f32 %v399, %v542
        %561 = vst [vmem:[%s249] sm:$0xff] %v545
        %562 = vst [vmem:[%s249 + $0x8] sm:$0xff] %v546
        %563 = vst [vmem:[%s249 + $0x10] sm:$0xff] %v547
        %564 = vst [vmem:[%s249 + $0x18] sm:$0xff] %v548
        %565 = vst [vmem:[%s249 + $0x20] sm:$0xff] %v549
        %566 = vst [vmem:[%s249 + $0x28] sm:$0xff] %v550
        %567 = vst [vmem:[%s249 + $0x30] sm:$0xff] %v551
        %568 = vst [vmem:[%s249 + $0x38] sm:$0xff] %v552
        %569 = vst [vmem:[%s249 + $0x40] sm:$0xff] %v553
        %570 = vst [vmem:[%s249 + $0x48] sm:$0xff] %v554
        %571 = vst [vmem:[%s249 + $0x50] sm:$0xff] %v555
        %572 = vst [vmem:[%s249 + $0x58] sm:$0xff] %v556
        %573 = vst [vmem:[%s249 + $0x60] sm:$0xff] %v557
        %574 = vst [vmem:[%s249 + $0x68] sm:$0xff] %v558
        %575 = vst [vmem:[%s249 + $0x70] sm:$0xff] %v559
        %576 = vst [vmem:[%s249 + $0x78] sm:$0xff] %v560
        %v577 = vld [vmem:[%s256] sm:$0xff]
        %v578 = vld [vmem:[%s256 + $0x8] sm:$0xff]
        %579 = vmatprep.subr.mxu0 0.0
        %580 = vmatpush1.xpose.msra.mxu0 %v366
        %581 = vmatprep.subr.mxu0 0.0
        %582 = vmatpush1.xpose.msra.mxu0 %v367
        %583 = vmatprep.subr.mxu0 0.0
        %584 = vmatpush1.xpose.msra.mxu0 %v368
        %585 = vmatprep.subr.mxu0 0.0
        %586 = vmatpush1.xpose.msra.mxu0 %v369
        %587 = vmatprep.subr.mxu0 0.0
        %588 = vmatpush1.xpose.msra.mxu0 %v370
        %589 = vmatprep.subr.mxu0 0.0
        %590 = vmatpush1.xpose.msra.mxu0 %v371
        %591 = vmatprep.subr.mxu0 0.0
        %592 = vmatpush1.xpose.msra.mxu0 %v372
        %593 = vmatprep.subr.mxu0 0.0
        %594 = vmatpush1.xpose.msra.mxu0 %v373
        %595 = vmatprep.subr.mxu0 0.0
        %596 = vmatpush1.xpose.msra.mxu0 %v374
        %597 = vmatprep.subr.mxu0 0.0
        %598 = vmatpush1.xpose.msra.mxu0 %v375
        %599 = vmatprep.subr.mxu0 0.0
        %600 = vmatpush1.xpose.msra.mxu0 %v376
        %601 = vmatprep.subr.mxu0 0.0
        %602 = vmatpush1.xpose.msra.mxu0 %v377
        %603 = vmatprep.subr.mxu0 0.0
        %604 = vmatpush1.xpose.msra.mxu0 %v378
        %605 = vmatprep.subr.mxu0 0.0
        %606 = vmatpush1.xpose.msra.mxu0 %v379
        %607 = vmatprep.subr.mxu0 0.0
        %608 = vmatpush1.xpose.msra.mxu0 %v380
        %609 = vmatprep.subr.mxu0 0.0
        %610 = vmatpush1.xpose.msra.mxu0 %v381
        %611 = vmatprep.subr.mxu0 0.0
        %612 = vmatpush1.xpose.msra.mxu0 0.0
        %613 = vmatprep.subr.mxu0 0.0
        %614 = vmatpush1.xpose.msra.mxu0 0.0
        %615 = vmatprep.subr.mxu0 0.0
        %616 = vmatpush1.xpose.msra.mxu0 0.0
        %617 = vmatprep.subr.mxu0 0.0
        %618 = vmatpush1.xpose.msra.mxu0 0.0
        %619 = vmatprep.subr.mxu0 0.0
        %620 = vmatpush1.xpose.msra.mxu0 0.0
        %621 = vmatprep.subr.mxu0 0.0
        %622 = vmatpush1.xpose.msra.mxu0 0.0
        %623 = vmatprep.subr.mxu0 0.0
        %624 = vmatpush1.xpose.msra.mxu0 0.0
        %625 = vmatprep.subr.mxu0 0.0
        %626 = vmatpush1.xpose.msra.mxu0 0.0
        %627 = vmatprep.subr.mxu0 0.0
        %628 = vmatpush1.xpose.msra.mxu0 0.0
        %629 = vmatprep.subr.mxu0 0.0
        %630 = vmatpush1.xpose.msra.mxu0 0.0
        %631 = vmatprep.subr.mxu0 0.0
        %632 = vmatpush1.xpose.msra.mxu0 0.0
        %633 = vmatprep.subr.mxu0 0.0
        %634 = vmatpush1.xpose.msra.mxu0 0.0
        %635 = vmatprep.subr.mxu0 0.0
        %636 = vmatpush1.xpose.msra.mxu0 0.0
        %637 = vmatprep.subr.mxu0 0.0
        %638 = vmatpush1.xpose.msra.mxu0 0.0
        %639 = vmatprep.subr.mxu0 0.0
        %640 = vmatpush1.xpose.msra.mxu0 0.0
        %641 = vmatprep.subr.mxu0 0.0
        %642 = vmatpush1.xpose.msra.mxu0 0.0
        %643 = vmatprep.mubr.f32.mxu0 0.0
        %644 = vmatmul.mubr.f32.gmra.mrb[0].mxu0 %v382
        %v645 = vpop.f32.mrb[0].mxu0
        %v646 = vadd.f32 0.0, %v645
        %v647 = vpop.f32.mrb[0].mxu0
        %648 = vmatprep.mubr.f32.mxu0 0.0
        %649 = vmatmul.mubr.f32.gmra.mrb[0].mxu0 %v383
        %v650 = vpop.f32.mrb[0].mxu0
        %v651 = vadd.f32 0.0, %v650
        %v652 = vpop.f32.mrb[0].mxu0
        %653 = vdwg.mxu0
        %v654 = vadd.f32 %v577, %v646
        %v655 = vadd.f32 %v578, %v651
        %656 = vst [vmem:[%s256] sm:$0xff] %v654
        %657 = vst [vmem:[%s256 + $0x8] sm:$0xff] %v655
        %s658 = sand.u32 %s105, 1
        %s659 = scalar_lea.sflag [#allocation6], %s658
        %s660 = sand.u32 %s105, 1
        %s661 = smul.addr %s660, 128
        %s662 = scalar_lea.vmem [#allocation9], %s661
        %s663 = sand.u32 %s131, 1
        %s664 = scalar_lea.sflag [#allocation11], %s663
        %s665 = sand.u32 %s131, 1
        %s666 = smul.addr %s665, 16
        %s667 = scalar_lea.vmem [#allocation10], %s666
        // Predicated region
        $region49: #{tpu_custom_call.1} parent=27 // pred_check
          %p668 = pneg %p115
        $region50: #{tpu_custom_call.1} parent=27 // pred_check_branch
          %670 = sbr.rel (%p668) target = $region52
        $region51: #{tpu_custom_call.1} parent=27 // pred_region
          %s672 = ssub.s32 2048, 2048
          %673 = vsyncadd %s659, %s672
          %s674 = smul.addr %s31, 16
          %s675 = smul.addr %s674, 128
          %s676 = scalar_lea.hbm %s2, %s675
          %s677 = sshll.u32 %s662, 4
          %s678 = int_to_ptr.vmem [resolvable:$true] %s677
          %683 = dma.vmem_to_hbm [thread:$0]  %s678, 2048, %s676, %s659, 128, 128, 8
        $region52: #{tpu_custom_call.1} parent=27 // pred_fallthru
          _
        // Predicated region
        $region53: #{tpu_custom_call.1} parent=27 // pred_check
          %p684 = pneg %p141
        $region54: #{tpu_custom_call.1} parent=27 // pred_check_branch
          %686 = sbr.rel (%p684) target = $region56
        $region55: #{tpu_custom_call.1} parent=27 // pred_region
          %s688 = ssub.s32 256, 256
          %689 = vsyncadd %s664, %s688
          %s690 = smul.addr %s31, 2
          %s691 = smul.addr %s690, 128
          %s692 = scalar_lea.hbm %s3, %s691
          %s693 = sshll.u32 %s667, 4
          %s694 = int_to_ptr.vmem [resolvable:$true] %s693
          %699 = dma.vmem_to_hbm [thread:$0]  %s694, 256, %s692, %s664, 128, 128, 8
        $region56: #{tpu_custom_call.1} parent=27 // pred_fallthru
          _
      $region28: #{tpu_custom_call.1} parent=5 // pred_fallthru
        _
      %p700 = scmp.le.s32.totalorder 2, %s22
      // Predicated region
      $region57: #{tpu_custom_call.1} parent=5 // pred_check
        %p701 = pneg %p700
      $region58: #{tpu_custom_call.1} parent=5 // pred_check_branch
        %703 = sbr.rel (%p701) target = $region60
      $region59: #{tpu_custom_call.1} parent=5 // pred_region
        %s704 = ssub.s32 %s22, 2
        // Predicated region
        $region61: #{tpu_custom_call.1} parent=59 // pred_check
          %p705 = pneg %p121
        $region62: #{tpu_custom_call.1} parent=59 // pred_check_branch
          %707 = sbr.rel (%p705) target = $region64
        $region63: #{tpu_custom_call.1} parent=59 // pred_region
          %s708 = sand.u32 %s106, 1
          %s709 = scalar_lea.sflag [#allocation6], %s708
          %s710 = sand.u32 %s106, 1
          %s711 = smul.addr %s710, 128
          %s712 = scalar_lea.vmem [#allocation9], %s711
          %713 = dma.done %s709, 2048
        $region64: #{tpu_custom_call.1} parent=59 // pred_fallthru
          _
        // Predicated region
        $region65: #{tpu_custom_call.1} parent=59 // pred_check
          %p714 = pneg %p147
        $region66: #{tpu_custom_call.1} parent=59 // pred_check_branch
          %716 = sbr.rel (%p714) target = $region68
        $region67: #{tpu_custom_call.1} parent=59 // pred_region
          %s717 = sand.u32 %s132, 1
          %s718 = scalar_lea.sflag [#allocation11], %s717
          %s719 = sand.u32 %s132, 1
          %s720 = smul.addr %s719, 16
          %s721 = scalar_lea.vmem [#allocation10], %s720
          %722 = dma.done %s718, 256
        $region68: #{tpu_custom_call.1} parent=59 // pred_fallthru
          _
      $region60: #{tpu_custom_call.1} parent=5 // pred_fallthru
        _
    $region6: #{tpu_custom_call.1} parent=1 // loop_footer
      %s26 = sadd.s32 1, %s22
    $region7: #{tpu_custom_call.1} parent=1 // loop_footer_branch
      %21 = sbr.rel target = $region3
    $region8: #{tpu_custom_call.1} parent=1 // loop_exit
      _
    %723 = vsyncpa [#allocation5], 1
    %s724 = scalar_lea.sflag [#allocation5], 1
    %725 = vsyncpa %s724, 1
    %726 = vsyncpa [#allocation8], 1
    %s727 = scalar_lea.sflag [#allocation8], 1
    %728 = vsyncpa %s727, 1
    %729 = vsyncpa [#allocation6], 1
    %s730 = scalar_lea.sflag [#allocation6], 1
    %731 = vsyncpa %s730, 1
    %732 = vsyncpa [#allocation11], 1
    %s733 = scalar_lea.sflag [#allocation11], 1
    %734 = vsyncpa %s733, 1

</llo_original>
